<compile_context>
chip_gen: v6e
topology: v6e:2x2x1
jax: 0.10.0
libtpu: 0.0.40
codegen_flags: <defaults>
</compile_context>

<pallas_src>
import functools

import jax
import jax.numpy as jnp
from jax.experimental import pallas as pl
from jax.experimental.pallas import tpu as pltpu


def _final_return_error_kernel(stk_ref, out_ref, acc_ref, *, b_real, total_cols, tc):
    """stk_ref: (5, 8, tc) block of [pred, targ, last_feat, min, max] (normalized).

    Accumulates sum_i |(pred_i - targ_i) * scale_i / last_feat_i| over the real
    series in this block into acc_ref; writes the final sum on the last step.
    """
    g = pl.program_id(0)

    @pl.when(g == 0)
    def _():
        acc_ref[...] = jnp.zeros_like(acc_ref)

    pn = stk_ref[0]          # (8, tc) normalized last-step predictions
    tn = stk_ref[1]          # (8, tc) normalized last-step targets
    fn = stk_ref[2]          # (8, tc) normalized last feature values
    mn = stk_ref[3]          # (8, tc) per-series min
    mx = stk_ref[4]          # (8, tc) per-series max

    scale = mx - mn
    last_feat = fn * scale + mn            # de-normalized last feature value
    diff = (pn - tn) * scale               # last_pred - last_target (de-normalized)
    # NOTE: last_feat ~ 0 may yield inf/nan for real series — matches reference
    # (no guard there either).  Padded lanes are masked below regardless.
    err = jnp.abs(diff * pl.reciprocal(last_feat, approx=False))

    # Mask out padded lanes (flat series index >= b_real).
    row = jax.lax.broadcasted_iota(jnp.int32, (8, tc), 0)
    col = jax.lax.broadcasted_iota(jnp.int32, (8, tc), 1)
    flat_idx = row * total_cols + g * tc + col
    err = jnp.where(flat_idx < b_real, err, 0.0)

    acc_ref[...] += jnp.sum(err)

    @pl.when(g == pl.num_programs(0) - 1)
    def _():
        out_ref[...] = acc_ref[...]


def mean_final_return_error(predictions, targets, last_features, min_vals,
                            max_vals, *, lane_tile=8192):
    """predictions/targets: (B, T); last_features/min_vals/max_vals: (B,)."""
    assert predictions.shape == targets.shape
    B, _ = predictions.shape

    # Only the final timestep matters -> slice it out in JAX (O(B) elements;
    # the other T-1 columns never enter the kernel's DMA traffic).
    last_pred = predictions[:, -1].astype(jnp.float32)
    last_targ = targets[:, -1].astype(jnp.float32)
    lf = last_features.astype(jnp.float32)
    mn = min_vals.astype(jnp.float32)
    mx = max_vals.astype(jnp.float32)

    # Sublane-dense layout: series laid out row-major over an (8, cols) slab,
    # cols a multiple of 128.  Tile the lane axis with up to `lane_tile` lanes
    # per grid step (5*8*tc*4B*2buf ~ 2.6 MiB at the default -> fits the scoped
    # VMEM default on v5e/v6e/v7x without raising vmem_limit_bytes).
    min_cols = pl.cdiv(B, 8 * 128) * 128          # smallest valid lane extent
    tc = min(lane_tile, min_cols)
    cols = pl.cdiv(min_cols, tc) * tc             # padded lane extent (mult of tc)
    bp = 8 * cols                                 # padded series count
    grid_n = cols // tc

    def pad(x, fill):
        return jnp.pad(x, (0, bp - B), constant_values=fill)

    # Padded lanes get benign fill values (scale=1, last_feat=0.5, diff=0) so
    # they produce exactly 0 even before masking; the kernel masks them anyway.
    stacked = jnp.stack(
        [pad(last_pred, 0.0), pad(last_targ, 0.0), pad(lf, 0.5),
         pad(mn, 0.0), pad(mx, 1.0)], axis=0,
    ).reshape(5, 8, cols)

    kernel = functools.partial(_final_return_error_kernel,
                               b_real=B, total_cols=cols, tc=tc)

    total = pl.pallas_call(
        kernel,
        out_shape=jax.ShapeDtypeStruct((1, 1), jnp.float32),
        grid=(grid_n,),
        in_specs=[pl.BlockSpec((5, 8, tc), lambda g: (0, 0, g))],
        out_specs=pl.BlockSpec((1, 1), lambda g: (0, 0)),
        scratch_shapes=[pltpu.VMEM((1, 1), jnp.float32)],
        compiler_params=pltpu.CompilerParams(
            # Cross-step scalar accumulator -> reduction axis must be "arbitrary".
            dimension_semantics=("arbitrary",)),
    )(stacked)

    return total[0, 0] / B


def _ref_numpy(predictions, targets, last_features, min_vals, max_vals):
    """Pure-numpy loop mirroring the PyTorch forward exactly."""
    import numpy as np
    p_np, t_np = np.array(predictions), np.array(targets)
    lf_np, mn_np, mx_np = (np.array(last_features), np.array(min_vals),
                           np.array(max_vals))
    errs = []
    for i in range(p_np.shape[0]):
        sc = mx_np[i] - mn_np[i]
        last_feature = lf_np[i] * sc + mn_np[i]
        last_target = float(t_np[i][-1]) * sc + mn_np[i]
        last_pred = float(p_np[i][-1]) * sc + mn_np[i]
        predicted_return = (last_pred - last_feature) / last_feature
        actual_return = (last_target - last_feature) / last_feature
        errs.append(abs(predicted_return - actual_return))
    return float(np.mean(errs))


def _make_inputs(key, B, T):
    k1, k2, k3, k4, k5 = jax.random.split(key, 5)
    predictions = jax.random.uniform(k1, (B, T), jnp.float32)   # normalized [0,1]
    targets = jax.random.uniform(k2, (B, T), jnp.float32)
    # Normalized "last feature" values, kept away from 0 after de-normalization.
    last_features = jax.random.uniform(k3, (B,), jnp.float32, 0.3, 0.9)
    # normalization_factors per series: (min_val, max_val) with max > min.
    min_vals = jax.random.uniform(k4, (B,), jnp.float32, 1.0, 5.0)
    max_vals = min_vals + jax.random.uniform(k5, (B,), jnp.float32, 5.0, 20.0)
    return predictions, targets, last_features, min_vals, max_vals


if __name__ == "__main__":
    key = jax.random.PRNGKey(0)
    k_a, k_b = jax.random.split(key)

    ok = True
    for k, (B, T) in ((k_a, (8, 64)), (k_b, (300, 16))):
        args = _make_inputs(k, B, T)
        result = mean_final_return_error(*args)
        jax.block_until_ready(result)
        ref = _ref_numpy(*args)
        assert abs(float(result) - ref) < 1e-4 * max(1.0, abs(ref)), (B, float(result), ref)

    if ok:
        print("KERNEL_OK")
</pallas_src>

<mosaic_0001>
module attributes {stable_mosaic.version = 11 : i64} {
  func.func @_final_return_error_kernel(%arg0: i32, %arg1: memref<5x8x128xf32, #tpu.memory_space<vmem>>, %arg2: memref<1x1xf32, #tpu.memory_space<vmem>>, %arg3: memref<1x1xf32, #tpu.memory_space<vmem>>) attributes {dimension_semantics = [#tpu.dimension_semantics<arbitrary>], iteration_bounds = array<i64: 1>, scalar_prefetch = 0 : i64, scratch_operands = 1 : i64, tpu.core_type = #tpu.core_type<tc>, window_params = [{transform_indices = @transform_0, window_bounds = array<i64: 5, 8, 128>}, {pipeline_mode = #tpu.pipeline_mode<synchronous>, transform_indices = @transform_1, window_bounds = array<i64: 1, 1>}]} {
    %c0_i32 = arith.constant 0 : i32
    %0 = arith.cmpi eq, %arg0, %c0_i32 : i32
    %1 = arith.extui %0 : i1 to i32
    %c0_i32_0 = arith.constant 0 : i32
    %2 = arith.cmpi ne, %1, %c0_i32_0 : i32
    scf.if %2 {
      %cst_19 = arith.constant 0.000000e+00 : f32
      %44 = vector.broadcast %cst_19 : f32 to vector<1x1xf32>
      %c0_20 = arith.constant 0 : index
      %c0_21 = arith.constant 0 : index
      %45 = vector.load %arg3[%c0_20, %c0_21] : memref<1x1xf32, #tpu.memory_space<vmem>>, vector<1x1xf32>
      tpu.vector_store %arg3[%c0_20, %c0_21], %44 {strides = array<i32>} : memref<1x1xf32, #tpu.memory_space<vmem>>, vector<1x1xf32>,
    } else {
    }
    %c0 = arith.constant 0 : index
    %c0_1 = arith.constant 0 : index
    %c0_2 = arith.constant 0 : index
    %3 = vector.load %arg1[%c0, %c0_1, %c0_2] : memref<5x8x128xf32, #tpu.memory_space<vmem>>, vector<1x8x128xf32>
    %4 = vector.shape_cast %3 : vector<1x8x128xf32> to vector<8x128xf32>
    %c1 = arith.constant 1 : index
    %c0_3 = arith.constant 0 : index
    %c0_4 = arith.constant 0 : index
    %5 = vector.load %arg1[%c1, %c0_3, %c0_4] : memref<5x8x128xf32, #tpu.memory_space<vmem>>, vector<1x8x128xf32>
    %6 = vector.shape_cast %5 : vector<1x8x128xf32> to vector<8x128xf32>
    %c2 = arith.constant 2 : index
    %c0_5 = arith.constant 0 : index
    %c0_6 = arith.constant 0 : index
    %7 = vector.load %arg1[%c2, %c0_5, %c0_6] : memref<5x8x128xf32, #tpu.memory_space<vmem>>, vector<1x8x128xf32>
    %8 = vector.shape_cast %7 : vector<1x8x128xf32> to vector<8x128xf32>
    %c3 = arith.constant 3 : index
    %c0_7 = arith.constant 0 : index
    %c0_8 = arith.constant 0 : index
    %9 = vector.load %arg1[%c3, %c0_7, %c0_8] : memref<5x8x128xf32, #tpu.memory_space<vmem>>, vector<1x8x128xf32>
    %10 = vector.shape_cast %9 : vector<1x8x128xf32> to vector<8x128xf32>
    %c4 = arith.constant 4 : index
    %c0_9 = arith.constant 0 : index
    %c0_10 = arith.constant 0 : index
    %11 = vector.load %arg1[%c4, %c0_9, %c0_10] : memref<5x8x128xf32, #tpu.memory_space<vmem>>, vector<1x8x128xf32>
    %12 = vector.shape_cast %11 : vector<1x8x128xf32> to vector<8x128xf32>
    %13 = arith.subf %12, %10 : vector<8x128xf32>
    %14 = arith.mulf %8, %13 : vector<8x128xf32>
    %15 = arith.addf %14, %10 : vector<8x128xf32>
    %16 = arith.subf %4, %6 : vector<8x128xf32>
    %17 = arith.mulf %16, %13 : vector<8x128xf32>
    %18 = tpu.reciprocal %15 : vector<8x128xf32> -> vector<8x128xf32>
    %19 = arith.mulf %17, %18 : vector<8x128xf32>
    %20 = math.absf %19 : vector<8x128xf32>
    %21 = tpu.iota {dimensions = array<i32: 0>} : vector<8x128xi32>
    %22 = tpu.iota {dimensions = array<i32: 1>} : vector<8x128xi32>
    %c128_i32 = arith.constant 128 : i32
    %23 = vector.broadcast %c128_i32 : i32 to vector<8x128xi32>
    %24 = arith.muli %21, %23 : vector<8x128xi32>
    %c128_i32_11 = arith.constant 128 : i32
    %25 = arith.muli %arg0, %c128_i32_11 : i32
    %26 = vector.broadcast %25 : i32 to vector<8x128xi32>
    %27 = arith.addi %24, %26 : vector<8x128xi32>
    %28 = arith.addi %27, %22 : vector<8x128xi32>
    %c8_i32 = arith.constant 8 : i32
    %29 = vector.broadcast %c8_i32 : i32 to vector<8x128xi32>
    %30 = arith.cmpi slt, %28, %29 : vector<8x128xi32>
    %cst = arith.constant 0.000000e+00 : f32
    %31 = vector.broadcast %cst : f32 to vector<8x128xf32>
    %32 = arith.select %30, %20, %31 : vector<8x128xi1>, vector<8x128xf32>
    %c0_12 = arith.constant 0 : index
    %c0_13 = arith.constant 0 : index
    %33 = vector.load %arg3[%c0_12, %c0_13] : memref<1x1xf32, #tpu.memory_space<vmem>>, vector<1x1xf32>
    %34 = vector.shape_cast %32 : vector<8x128xf32> to vector<1x8x128xf32>
    %cst_14 = arith.constant dense<0.000000e+00> : vector<1xf32>
    %35 = vector.multi_reduction <add>, %34, %cst_14 [1, 2] : vector<1x8x128xf32> to vector<1xf32>
    %36 = vector.shape_cast %35 : vector<1xf32> to vector<1x1x1xf32>
    %37 = vector.extract %36[0, 0, 0] : f32 from vector<1x1x1xf32>
    %38 = vector.broadcast %37 : f32 to vector<1x1xf32>
    %39 = arith.addf %33, %38 : vector<1x1xf32>
    %c0_15 = arith.constant 0 : index
    %c0_16 = arith.constant 0 : index
    %40 = vector.load %arg3[%c0_15, %c0_16] : memref<1x1xf32, #tpu.memory_space<vmem>>, vector<1x1xf32>
    tpu.vector_store %arg3[%c0_15, %c0_16], %39 {strides = array<i32>} : memref<1x1xf32, #tpu.memory_space<vmem>>, vector<1x1xf32>,
    %c0_i32_17 = arith.constant 0 : i32
    %41 = arith.cmpi eq, %arg0, %c0_i32_17 : i32
    %42 = arith.extui %41 : i1 to i32
    %c0_i32_18 = arith.constant 0 : i32
    %43 = arith.cmpi ne, %42, %c0_i32_18 : i32
    scf.if %43 {
      %c0_19 = arith.constant 0 : index
      %c0_20 = arith.constant 0 : index
      %44 = vector.load %arg3[%c0_19, %c0_20] : memref<1x1xf32, #tpu.memory_space<vmem>>, vector<1x1xf32>
      %c0_21 = arith.constant 0 : index
      %c0_22 = arith.constant 0 : index
      %45 = vector.load %arg2[%c0_21, %c0_22] : memref<1x1xf32, #tpu.memory_space<vmem>>, vector<1x1xf32>
      tpu.vector_store %arg2[%c0_21, %c0_22], %44 {strides = array<i32>} : memref<1x1xf32, #tpu.memory_space<vmem>>, vector<1x1xf32>,
    } else {
    }
    return
  }
  func.func @transform_0(%arg0: i32) -> (i32, i32, i32) {
    %c0_i32 = arith.constant 0 : i32
    %c0_i32_0 = arith.constant 0 : i32
    %c0_i32_1 = arith.constant 0 : i32
    return %c0_i32, %c0_i32_0, %arg0 : i32, i32, i32
  }
  func.func @transform_1(%arg0: i32) -> (i32, i32) {
    %c0_i32 = arith.constant 0 : i32
    %c0_i32_0 = arith.constant 0 : i32
    %c0_i32_1 = arith.constant 0 : i32
    return %c0_i32, %c0_i32_0 : i32, i32
  }
}

</mosaic_0001>

<llo_original>
// kernel: tpu_custom_call.1
$region0: #{tpu_custom_call.1}
  #allocation0 [shape = 'u32[]', space=smem, size = 0x4, offset = 0x4, fixed_abs, tag = 'smem constant byte address 0x4 - core index']
  #allocation1 [shape = 'u32[144,128]{1,0:T(1,128)}', space=vmem, size = 0x12000, scoped, tag = 'internal scratch']
  #allocation2 [shape = 'f32[1,1]{1,0:T(1,128)}', space=vmem, size = 0x200, scoped, tag = 'scratch operand']
  %s0 = inlined_call_operand.hbm [shape: f32[5,8,128], index: 0, kind: input, shape index: {}]
  %s1 = inlined_call_operand.hbm [shape: f32[1,1], index: 1, kind: output, shape index: {}]
  %s2 = sld [smem:[#allocation0]]
  $region26: #{tpu_custom_call.1} parent=0
    _
  %s4 = ssub.s32 1, %s2
  %s5 = scalar_select 0, %s4, %s2
  $region1: #{tpu_custom_call.1} parent=0
    #allocation3 [shape = 'u8[20480]{0}', space=vmem, size = 0x5000, scoped, tag = 'input window, operand 0, single buffered']
    #allocation4 [shape = 's32[1]{0}', space=sflag, size = 0x4, scoped, tag = 'scoped memory for tpu_custom_call.1']
    #allocation5 [shape = 's32[1]{0}', space=sflag, size = 0x4, scoped, tag = 'scoped memory for tpu_custom_call.1']
    #allocation6 [shape = 'u8[512]{0}', space=vmem, size = 0x400, scoped, tag = 'output window, operand 0, single buffered']
    %6 = vsyncpa [#allocation4], 0
    %7 = vsyncpa [#allocation5], 0
    // Predicated region
    $region2: #{tpu_custom_call.1} parent=1 // pred_check
      _
    $region3: #{tpu_custom_call.1} parent=1 // pred_check_branch
      %9 = sbr.rel (0) target = $region5
    $region4: #{tpu_custom_call.1} parent=1 // pred_region
      %s11 = ssub.s32 640, 640
      %12 = vsyncadd [#allocation4], %s11
      %s13 = sshll.u32 [#allocation3], 4
      %s14 = int_to_ptr.vmem [resolvable:$true] %s13
      %19 = dma.hbm_to_vmem [thread:$0]  %s0, 640, %s14, [#allocation4], 128, 128, 8
    $region5: #{tpu_custom_call.1} parent=1 // pred_fallthru
      _
    // Predicated region
    $region6: #{tpu_custom_call.1} parent=1 // pred_check
      _
    $region7: #{tpu_custom_call.1} parent=1 // pred_check_branch
      %21 = sbr.rel (0) target = $region9
    $region8: #{tpu_custom_call.1} parent=1 // pred_region
      %22 = dma.done [#allocation4], 640
    $region9: #{tpu_custom_call.1} parent=1 // pred_fallthru
      _
    %p23 = scmp.eq.s32.totalorder 0, 0
    // Predicated region
    $region10: #{tpu_custom_call.1} parent=1 // pred_check
      %p24 = pneg %p23
    $region11: #{tpu_custom_call.1} parent=1 // pred_check_branch
      %26 = sbr.rel (%p24) target = $region13
    $region12: #{tpu_custom_call.1} parent=1 // pred_region
      %vm27 = vcmask 0
      %28 = vst.msk [vmem:[#allocation2] sm:$0x1] %vm27, 0.0
    $region13: #{tpu_custom_call.1} parent=1 // pred_fallthru
      _
    %v29 = vld [vmem:[#allocation3] sm:$0xff]
    %s30 = scalar_lea.vmem [#allocation3], 8
    %v31 = vld [vmem:[%s30] sm:$0xff]
    %s32 = scalar_lea.vmem [#allocation3], 16
    %v33 = vld [vmem:[%s32] sm:$0xff]
    %s34 = scalar_lea.vmem [#allocation3], 24
    %v35 = vld [vmem:[%s34] sm:$0xff]
    %s36 = scalar_lea.vmem [#allocation3], 32
    %v37 = vld [vmem:[%s36] sm:$0xff]
    %v38 = vsub.f32 %v37, %v35
    %v39 = vmul.f32 %v33, %v38
    %v40 = vadd.f32 %v39, %v35
    %v41 = vsub.f32 %v29, %v31
    %v42 = vmul.f32 %v41, %v38
    %v43 = vrcp.pop %v40
    %v44 = vmul.f32 %v42, %v43
    %v45 = vand.u32 2147483647, %v44
    %v46 = vlaneseq
    %v47 = vshrl.u32 %v46, 7
    %v48 = vlaneseq
    %v49 = vand.u32 %v48, 127
    %v50 = vmul.u32 %v47, 128
    %s51 = smul.u32 0, 128
    %v52 = vstv %s51
    %v53 = vadd.s32 %v50, %v52
    %v54 = vadd.s32 %v53, %v49
    %vm55 = vcmp.lt.s32.totalorder %v54, 8
    %v56 = vsel %vm55, %v45, 0.0
    %v57 = vld [vmem:[#allocation2] sm:$0x1]
    %58 = vadd.xlane.f32.xlu0 %v56
    %v59 = vpop.xlane.xlu0 %58
    %v60 = vrot.slane %v59, 4
    %v61 = vadd.f32 %v59, %v60
    %v62 = vrot.slane %v61, 2
    %v63 = vadd.f32 %v61, %v62
    %v64 = vrot.slane %v63, 1
    %v65 = vadd.f32 %v63, %v64
    %s66 = vtos %v65
    %v67 = vstv %s66
    %v68 = vadd.f32 %v57, %v67
    %vm69 = vcmask 0
    %70 = vst.msk [vmem:[#allocation2] sm:$0x1] %vm69, %v68
    // Predicated region
    $region14: #{tpu_custom_call.1} parent=1 // pred_check
      %p71 = pneg %p23
    $region15: #{tpu_custom_call.1} parent=1 // pred_check_branch
      %73 = sbr.rel (%p71) target = $region17
    $region16: #{tpu_custom_call.1} parent=1 // pred_region
      %v74 = vld [vmem:[#allocation2] sm:$0x1]
      %75 = vst.msk [vmem:[#allocation6] sm:$0x1] %vm69, %v74
    $region17: #{tpu_custom_call.1} parent=1 // pred_fallthru
      _
    // Predicated region
    $region18: #{tpu_custom_call.1} parent=1 // pred_check
      _
    $region19: #{tpu_custom_call.1} parent=1 // pred_check_branch
      %77 = sbr.rel (0) target = $region21
    $region20: #{tpu_custom_call.1} parent=1 // pred_region
      %s79 = ssub.s32 16, 16
      %80 = vsyncadd [#allocation5], %s79
      %s82 = sshll.u32 [#allocation6], 4
      %s83 = int_to_ptr.vmem [resolvable:$true] %s82
      %85 = dma.vmem_to_hbm [thread:$0]  %s83, 16, %s1, [#allocation5]
    $region21: #{tpu_custom_call.1} parent=1 // pred_fallthru
      _
    // Predicated region
    $region22: #{tpu_custom_call.1} parent=1 // pred_check
      _
    $region23: #{tpu_custom_call.1} parent=1 // pred_check_branch
      %87 = sbr.rel (0) target = $region25
    $region24: #{tpu_custom_call.1} parent=1 // pred_region
      %88 = dma.done [#allocation5], 16
    $region25: #{tpu_custom_call.1} parent=1 // pred_fallthru
      _
    %89 = vsyncpa [#allocation4], 1
    %90 = vsyncpa [#allocation5], 1

</llo_original>
